<compile_context>
chip_gen: v7x
topology: tpu7x:2x2x1
jax: 0.10.0
libtpu: 0.0.40
codegen_flags: <defaults>
</compile_context>

<pallas_src>
import math

import jax
import jax.numpy as jnp
from jax import lax
from jax.experimental import pallas as pl
from jax.experimental.pallas import tpu as pltpu


_SQRT_2_OVER_PI = 0.7978845608028654

# Tile-selection VMEM budget (double-buffered tiles + accumulator) and the
# scoped-VMEM limit handed to Mosaic. Both comfortably under v7x's 64 MiB.
_VMEM_TILE_BUDGET = 40 * 1024 * 1024
_VMEM_LIMIT_BYTES = 48 * 1024 * 1024


def _gelu_tanh(x):
    # GELU(approximate='tanh'): 0.5*x*(1 + tanh(sqrt(2/pi)*(x + 0.044715*x^3)))
    return 0.5 * x * (1.0 + jnp.tanh(_SQRT_2_OVER_PI * (x + 0.044715 * x * x * x)))


def _round_up(x, m):
    return ((x + m - 1) // m) * m


def _pad2d(a, rows, cols):
    if a.shape == (rows, cols):
        return a
    return jnp.zeros((rows, cols), a.dtype).at[: a.shape[0], : a.shape[1]].set(a)


def _choose_tiles(m, cin_p, cout_p, hidden, itemsize):
    """Pick (TM, TH): as large as possible while the working set fits VMEM."""
    tm = min(512, _round_up(m, 16))            # sublane-aligned for f32 & bf16
    th = min(1024, _round_up(hidden, 128))     # MXU-friendly reduction tile

    def vmem_bytes(tm_, th_):
        x_t = tm_ * cin_p * itemsize
        w1_t = th_ * cin_p * itemsize
        w2_t = cout_p * th_ * itemsize
        o_t = tm_ * cout_p * itemsize
        acc = tm_ * cout_p * 4                 # f32 accumulator (single buffer)
        return 2 * (x_t + w1_t + w2_t + o_t) + acc

    while vmem_bytes(tm, th) > _VMEM_TILE_BUDGET and th > 128:
        th = max(128, th // 2)
    while vmem_bytes(tm, th) > _VMEM_TILE_BUDGET and tm > 16:
        tm = max(16, tm // 2)
    return tm, th


def mlp_kernel(x_ref, w1_ref, w2_ref, o_ref, acc_ref):
    """One (M-tile, H-tile) grid step of  out = GELU_tanh(x @ W1^T) @ W2^T.

    Weights are in PyTorch nn.Linear layout (out_features, in_features); the
    contractions are expressed with dot_general dimension numbers so no
    transposed weight copies are needed anywhere.
    """
    k = pl.program_id(1)

    @pl.when(k == 0)
    def _():
        acc_ref[...] = jnp.zeros_like(acc_ref)

    x = x_ref[...]
    # fc1 partial: (TM, TH) = x @ w1_tile.T  (MXU, f32 accumulation).
    h = lax.dot_general(
        x,
        w1_ref[...],
        dimension_numbers=(((1,), (1,)), ((), ())),
        preferred_element_type=jnp.float32,
    )
    # tanh-approx GELU in f32 (EUP tanh + VPU). Exact under H-tiling because
    # GELU is applied per hidden element, before the fc2 reduction over H.
    g = _gelu_tanh(h)
    # fc2 partial: (TM, C_out) += g @ w2_tile.T, accumulated in f32 scratch.
    acc_ref[...] += lax.dot_general(
        g.astype(x.dtype),
        w2_ref[...],
        dimension_numbers=(((1,), (1,)), ((), ())),
        preferred_element_type=jnp.float32,
    )

    @pl.when(k == pl.num_programs(1) - 1)
    def _():
        o_ref[...] = acc_ref[...].astype(o_ref.dtype)


def mlp_forward(x, w1, w2, *, tm=None, th=None):
    """MLP forward: GELU_tanh(x @ w1.T) @ w2.T  (bias-free).

    x:  (..., C_in)
    w1: (H, C_in)    -- PyTorch nn.Linear weight layout
    w2: (C_out, H)   -- PyTorch nn.Linear weight layout
    """
    in_features = x.shape[-1]
    hidden_features, in_features_w = w1.shape
    out_features, hidden_features_w = w2.shape
    assert in_features_w == in_features
    assert hidden_features_w == hidden_features

    lead_shape = x.shape[:-1]
    m = math.prod(lead_shape) if lead_shape else 1
    x2d = x.reshape(m, in_features)
    dtype = x.dtype
    itemsize = jnp.dtype(dtype).itemsize

    # Lane-dense feature dims: pad C_in / C_out to multiples of 128 so MXU K/N
    # are full and the output store is an unmasked vst. Zero padding is exact.
    cin_p = _round_up(in_features, 128)
    cout_p = _round_up(out_features, 128)

    auto_tm, auto_th = _choose_tiles(m, cin_p, cout_p, hidden_features, itemsize)
    tm = tm or auto_tm
    th = th or auto_th

    m_p = _round_up(m, tm)
    h_p = _round_up(hidden_features, th)

    x_pad = _pad2d(x2d, m_p, cin_p)       # no-op when already aligned
    w1_pad = _pad2d(w1, h_p, cin_p)
    w2_pad = _pad2d(w2, cout_p, h_p)

    grid = (m_p // tm, h_p // th)

    cost = pl.CostEstimate(
        flops=2 * m_p * h_p * (cin_p + cout_p),
        transcendentals=m_p * h_p,
        bytes_accessed=(
            m_p * cin_p                              # x read once per M tile
            + grid[0] * (h_p * cin_p + cout_p * h_p)  # weights re-read per M tile
            + m_p * cout_p                           # output written once
        )
        * itemsize,
    )

    out_pad = pl.pallas_call(
        mlp_kernel,
        out_shape=jax.ShapeDtypeStruct((m_p, cout_p), dtype),
        grid_spec=pltpu.PrefetchScalarGridSpec(
            num_scalar_prefetch=0,
            grid=grid,
            in_specs=[
                # x tile: changes with i only -> stays VMEM-resident across k.
                pl.BlockSpec((tm, cin_p), lambda i, k: (i, 0)),
                # w1 tile (H-blocked, PyTorch layout (H, C_in)).
                pl.BlockSpec((th, cin_p), lambda i, k: (k, 0)),
                # w2 tile (H-blocked, PyTorch layout (C_out, H)).
                pl.BlockSpec((cout_p, th), lambda i, k: (0, k)),
            ],
            out_specs=pl.BlockSpec((tm, cout_p), lambda i, k: (i, 0)),
            scratch_shapes=[pltpu.VMEM((tm, cout_p), jnp.float32)],
        ),
        compiler_params=pltpu.CompilerParams(
            # M tiles shard across TensorCores (megacore); H is a reduction.
            dimension_semantics=("parallel", "arbitrary"),
            vmem_limit_bytes=_VMEM_LIMIT_BYTES,
        ),
        cost_estimate=cost,
    )(x_pad, w1_pad, w2_pad)

    if (m_p, cout_p) != (m, out_features):
        out2d = out_pad[:m, :out_features]
    else:
        out2d = out_pad
    return out2d.reshape(*lead_shape, out_features)


if __name__ == "__main__":
    # Small shapes consistent with the module's forward (token-feature MLP).
    B, T = 2, 8
    in_features = 32
    hidden_features = 128
    out_features = 32

    key = jax.random.PRNGKey(0)
    kx, k1, k2 = jax.random.split(key, 3)
    x = jax.random.normal(kx, (B, T, in_features), dtype=jnp.float32)
    # PyTorch nn.Linear weight layout: (out_features, in_features)
    w1 = jax.random.normal(k1, (hidden_features, in_features), dtype=jnp.float32) * 0.02
    w2 = jax.random.normal(k2, (out_features, hidden_features), dtype=jnp.float32) * 0.02

    out = mlp_forward(x, w1, w2)
    out = jax.block_until_ready(out)

    # Reference in plain JAX (same semantics as the PyTorch module).
    h_ref = x @ w1.T
    g_ref = 0.5 * h_ref * (
        1.0 + jnp.tanh(_SQRT_2_OVER_PI * (h_ref + 0.044715 * h_ref ** 3))
    )
    out_ref = g_ref @ w2.T

    assert out.shape == (B, T, out_features)
    assert jnp.allclose(out, out_ref, atol=1e-4, rtol=1e-4)

    print("KERNEL_OK")
</pallas_src>

<mosaic_0001>
module attributes {stable_mosaic.version = 11 : i64} {
  func.func @mlp_kernel(%arg0: i32, %arg1: i32, %arg2: memref<16x128xf32, #tpu.memory_space<vmem>>, %arg3: memref<128x128xf32, #tpu.memory_space<vmem>>, %arg4: memref<128x128xf32, #tpu.memory_space<vmem>>, %arg5: memref<16x128xf32, #tpu.memory_space<vmem>>, %arg6: memref<16x128xf32, #tpu.memory_space<vmem>>) attributes {dimension_semantics = [#tpu.dimension_semantics<parallel>, #tpu.dimension_semantics<arbitrary>], iteration_bounds = array<i64: 1, 1>, scalar_prefetch = 0 : i64, scratch_operands = 1 : i64, tpu.core_type = #tpu.core_type<tc>, window_params = [{transform_indices = @transform_0, window_bounds = array<i64: 16, 128>}, {transform_indices = @transform_1, window_bounds = array<i64: 128, 128>}, {transform_indices = @transform_2, window_bounds = array<i64: 128, 128>}, {transform_indices = @transform_3, window_bounds = array<i64: 16, 128>}]} {
    %c0_i32 = arith.constant 0 : i32
    %0 = arith.cmpi eq, %arg1, %c0_i32 : i32
    %1 = arith.extui %0 : i1 to i32
    %c0_i32_0 = arith.constant 0 : i32
    %2 = arith.cmpi ne, %1, %c0_i32_0 : i32
    scf.if %2 {
      %cst_17 = arith.constant 0.000000e+00 : f32
      %27 = vector.broadcast %cst_17 : f32 to vector<16x128xf32>
      %c0_18 = arith.constant 0 : index
      %c0_19 = arith.constant 0 : index
      %28 = vector.load %arg6[%c0_18, %c0_19] : memref<16x128xf32, #tpu.memory_space<vmem>>, vector<16x128xf32>
      tpu.vector_store %arg6[%c0_18, %c0_19], %27 {strides = array<i32>} : memref<16x128xf32, #tpu.memory_space<vmem>>, vector<16x128xf32>,
    } else {
    }
    %c0 = arith.constant 0 : index
    %c0_1 = arith.constant 0 : index
    %3 = vector.load %arg2[%c0, %c0_1] : memref<16x128xf32, #tpu.memory_space<vmem>>, vector<16x128xf32>
    %c0_2 = arith.constant 0 : index
    %c0_3 = arith.constant 0 : index
    %4 = vector.load %arg3[%c0_2, %c0_3] : memref<128x128xf32, #tpu.memory_space<vmem>>, vector<128x128xf32>
    %cst = arith.constant dense<0.000000e+00> : vector<16x128xf32>
    %5 = tpu.matmul %3, %4, %cst {dimension_numbers = #tpu.dot_dimension_numbers<[1], [1], [0], [0], [0, 0, 1, 0], [], []>} : vector<16x128xf32>, vector<128x128xf32>, vector<16x128xf32> -> vector<16x128xf32>
    %cst_4 = arith.constant 5.000000e-01 : f32
    %6 = vector.broadcast %cst_4 : f32 to vector<16x128xf32>
    %7 = arith.mulf %6, %5 : vector<16x128xf32>
    %cst_5 = arith.constant 4.471500e-02 : f32
    %8 = vector.broadcast %cst_5 : f32 to vector<16x128xf32>
    %9 = arith.mulf %8, %5 : vector<16x128xf32>
    %10 = arith.mulf %9, %5 : vector<16x128xf32>
    %11 = arith.mulf %10, %5 : vector<16x128xf32>
    %12 = arith.addf %5, %11 : vector<16x128xf32>
    %cst_6 = arith.constant 0.797884583 : f32
    %13 = vector.broadcast %cst_6 : f32 to vector<16x128xf32>
    %14 = arith.mulf %13, %12 : vector<16x128xf32>
    %15 = math.tanh %14 : vector<16x128xf32>
    %cst_7 = arith.constant 1.000000e+00 : f32
    %16 = vector.broadcast %cst_7 : f32 to vector<16x128xf32>
    %17 = arith.addf %16, %15 : vector<16x128xf32>
    %18 = arith.mulf %7, %17 : vector<16x128xf32>
    %c0_8 = arith.constant 0 : index
    %c0_9 = arith.constant 0 : index
    %19 = vector.load %arg6[%c0_8, %c0_9] : memref<16x128xf32, #tpu.memory_space<vmem>>, vector<16x128xf32>
    %c0_10 = arith.constant 0 : index
    %c0_11 = arith.constant 0 : index
    %20 = vector.load %arg4[%c0_10, %c0_11] : memref<128x128xf32, #tpu.memory_space<vmem>>, vector<128x128xf32>
    %cst_12 = arith.constant dense<0.000000e+00> : vector<16x128xf32>
    %21 = tpu.matmul %18, %20, %cst_12 {dimension_numbers = #tpu.dot_dimension_numbers<[1], [1], [0], [0], [0, 0, 1, 0], [], []>} : vector<16x128xf32>, vector<128x128xf32>, vector<16x128xf32> -> vector<16x128xf32>
    %22 = arith.addf %19, %21 : vector<16x128xf32>
    %c0_13 = arith.constant 0 : index
    %c0_14 = arith.constant 0 : index
    %23 = vector.load %arg6[%c0_13, %c0_14] : memref<16x128xf32, #tpu.memory_space<vmem>>, vector<16x128xf32>
    tpu.vector_store %arg6[%c0_13, %c0_14], %22 {strides = array<i32>} : memref<16x128xf32, #tpu.memory_space<vmem>>, vector<16x128xf32>,
    %c0_i32_15 = arith.constant 0 : i32
    %24 = arith.cmpi eq, %arg1, %c0_i32_15 : i32
    %25 = arith.extui %24 : i1 to i32
    %c0_i32_16 = arith.constant 0 : i32
    %26 = arith.cmpi ne, %25, %c0_i32_16 : i32
    scf.if %26 {
      %c0_17 = arith.constant 0 : index
      %c0_18 = arith.constant 0 : index
      %27 = vector.load %arg6[%c0_17, %c0_18] : memref<16x128xf32, #tpu.memory_space<vmem>>, vector<16x128xf32>
      %c0_19 = arith.constant 0 : index
      %c0_20 = arith.constant 0 : index
      %28 = vector.load %arg5[%c0_19, %c0_20] : memref<16x128xf32, #tpu.memory_space<vmem>>, vector<16x128xf32>
      tpu.vector_store %arg5[%c0_19, %c0_20], %27 {strides = array<i32>} : memref<16x128xf32, #tpu.memory_space<vmem>>, vector<16x128xf32>,
    } else {
    }
    return
  }
  func.func @transform_0(%arg0: i32, %arg1: i32) -> (i32, i32) {
    %c0_i32 = arith.constant 0 : i32
    %c0_i32_0 = arith.constant 0 : i32
    return %arg0, %c0_i32 : i32, i32
  }
  func.func @transform_1(%arg0: i32, %arg1: i32) -> (i32, i32) {
    %c0_i32 = arith.constant 0 : i32
    %c0_i32_0 = arith.constant 0 : i32
    return %arg1, %c0_i32 : i32, i32
  }
  func.func @transform_2(%arg0: i32, %arg1: i32) -> (i32, i32) {
    %c0_i32 = arith.constant 0 : i32
    %c0_i32_0 = arith.constant 0 : i32
    return %c0_i32, %arg1 : i32, i32
  }
  func.func @transform_3(%arg0: i32, %arg1: i32) -> (i32, i32) {
    %c0_i32 = arith.constant 0 : i32
    %c0_i32_0 = arith.constant 0 : i32
    return %arg0, %c0_i32 : i32, i32
  }
}

</mosaic_0001>

<llo_original>
// kernel: tpu_custom_call.1
$region0: #{tpu_custom_call.1}
  #allocation0 [shape = 'u32[]', space=smem, size = 0x4, offset = 0x4, fixed_abs, tag = 'smem constant byte address 0x4 - core index']
  #allocation1 [shape = 'u32[144,128]{1,0:T(1,128)}', space=vmem, size = 0x12000, scoped, tag = 'internal scratch']
  #allocation2 [shape = 'f32[16,128]{1,0:T(8,128)}', space=vmem, size = 0x2000, scoped, tag = 'scratch operand']
  %s0 = inlined_call_operand.hbm [shape: f32[16,128], index: 0, kind: input, shape index: {}]
  %s1 = inlined_call_operand.hbm [shape: f32[128,128], index: 1, kind: input, shape index: {}]
  %s2 = inlined_call_operand.hbm [shape: f32[128,128], index: 2, kind: input, shape index: {}]
  %s3 = inlined_call_operand.hbm [shape: f32[16,128], index: 3, kind: output, shape index: {}]
  %s4 = sld [smem:[#allocation0]]
  $region42: #{tpu_custom_call.1} parent=0
    _
  %s6 = ssub.s32 1, %s4
  %s7 = scalar_select 0, %s6, %s4
  $region1: #{tpu_custom_call.1} parent=0
    #allocation3 [shape = 'u8[8192]{0}', space=vmem, size = 0x2000, scoped, tag = 'input window, operand 0, single buffered']
    #allocation4 [shape = 's32[1]{0}', space=sflag, size = 0x4, scoped, tag = 'scoped memory for tpu_custom_call.1']
    #allocation5 [shape = 's32[1]{0}', space=sflag, size = 0x4, scoped, tag = 'scoped memory for tpu_custom_call.1']
    #allocation6 [shape = 'u8[65536]{0}', space=vmem, size = 0x10000, scoped, tag = 'input window, operand 1, single buffered']
    #allocation7 [shape = 's32[1]{0}', space=sflag, size = 0x4, scoped, tag = 'scoped memory for tpu_custom_call.1']
    #allocation8 [shape = 'u8[65536]{0}', space=vmem, size = 0x10000, scoped, tag = 'input window, operand 2, single buffered']
    #allocation9 [shape = 'u8[8192]{0}', space=vmem, size = 0x2000, scoped, tag = 'output window, operand 0, single buffered']
    %8 = vsyncpa [#allocation4], 0
    %9 = vsyncpa [#allocation7], 0
    %10 = vsyncpa [#allocation5], 0
    // Predicated region
    $region2: #{tpu_custom_call.1} parent=1 // pred_check
      _
    $region3: #{tpu_custom_call.1} parent=1 // pred_check_branch
      %12 = sbr.rel (0) target = $region5
    $region4: #{tpu_custom_call.1} parent=1 // pred_region
      %s14 = ssub.s32 256, 256
      %15 = vsyncadd [#allocation4], %s14
      %s16 = sshll.u32 [#allocation3], 4
      %s17 = int_to_ptr.vmem [resolvable:$true] %s16
      %22 = dma.hbm_to_vmem [thread:$0]  %s0, 256, %s17, [#allocation4], 128, 128, 8
    $region5: #{tpu_custom_call.1} parent=1 // pred_fallthru
      _
    // Predicated region
    $region6: #{tpu_custom_call.1} parent=1 // pred_check
      _
    $region7: #{tpu_custom_call.1} parent=1 // pred_check_branch
      %24 = sbr.rel (0) target = $region9
    $region8: #{tpu_custom_call.1} parent=1 // pred_region
      %s26 = ssub.s32 2048, 2048
      %27 = vsyncadd [#allocation7], %s26
      %s28 = sshll.u32 [#allocation6], 4
      %s29 = int_to_ptr.vmem [resolvable:$true] %s28
      %34 = dma.hbm_to_vmem [thread:$0]  %s1, 2048, %s29, [#allocation7], 128, 128, 8
    $region9: #{tpu_custom_call.1} parent=1 // pred_fallthru
      _
    // Predicated region
    $region10: #{tpu_custom_call.1} parent=1 // pred_check
      _
    $region11: #{tpu_custom_call.1} parent=1 // pred_check_branch
      %36 = sbr.rel (0) target = $region13
    $region12: #{tpu_custom_call.1} parent=1 // pred_region
      %s38 = ssub.s32 2048, 2048
      %39 = vsyncadd [#allocation7], %s38
      %s40 = sshll.u32 [#allocation8], 4
      %s41 = int_to_ptr.vmem [resolvable:$true] %s40
      %46 = dma.hbm_to_vmem [thread:$0]  %s2, 2048, %s41, [#allocation7], 128, 128, 8
    $region13: #{tpu_custom_call.1} parent=1 // pred_fallthru
      _
    // Predicated region
    $region14: #{tpu_custom_call.1} parent=1 // pred_check
      _
    $region15: #{tpu_custom_call.1} parent=1 // pred_check_branch
      %48 = sbr.rel (0) target = $region17
    $region16: #{tpu_custom_call.1} parent=1 // pred_region
      %49 = dma.done [#allocation4], 256
    $region17: #{tpu_custom_call.1} parent=1 // pred_fallthru
      _
    // Predicated region
    $region18: #{tpu_custom_call.1} parent=1 // pred_check
      _
    $region19: #{tpu_custom_call.1} parent=1 // pred_check_branch
      %51 = sbr.rel (0) target = $region21
    $region20: #{tpu_custom_call.1} parent=1 // pred_region
      %52 = dma.done [#allocation7], 2048
    $region21: #{tpu_custom_call.1} parent=1 // pred_fallthru
      _
    // Predicated region
    $region22: #{tpu_custom_call.1} parent=1 // pred_check
      _
    $region23: #{tpu_custom_call.1} parent=1 // pred_check_branch
      %54 = sbr.rel (0) target = $region25
    $region24: #{tpu_custom_call.1} parent=1 // pred_region
      %55 = dma.done [#allocation7], 2048
    $region25: #{tpu_custom_call.1} parent=1 // pred_fallthru
      _
    %p56 = scmp.eq.s32.totalorder 0, 0
    // Predicated region
    $region26: #{tpu_custom_call.1} parent=1 // pred_check
      %p57 = pneg %p56
    $region27: #{tpu_custom_call.1} parent=1 // pred_check_branch
      %59 = sbr.rel (%p57) target = $region29
    $region28: #{tpu_custom_call.1} parent=1 // pred_region
      %60 = vst [vmem:[#allocation2] sm:$0xff] 0.0
      %61 = vst [vmem:[#allocation2 + $0x8] sm:$0xff] 0.0
    $region29: #{tpu_custom_call.1} parent=1 // pred_fallthru
      _
    %v62 = vld [vmem:[#allocation3] sm:$0xff]
    %v63 = vld [vmem:[#allocation3 + $0x8] sm:$0xff]
    %v64 = vld [vmem:[#allocation6] sm:$0xff]
    %v65 = vld [vmem:[#allocation6 + $0x8] sm:$0xff]
    %v66 = vld [vmem:[#allocation6 + $0x10] sm:$0xff]
    %v67 = vld [vmem:[#allocation6 + $0x18] sm:$0xff]
    %v68 = vld [vmem:[#allocation6 + $0x20] sm:$0xff]
    %v69 = vld [vmem:[#allocation6 + $0x28] sm:$0xff]
    %v70 = vld [vmem:[#allocation6 + $0x30] sm:$0xff]
    %v71 = vld [vmem:[#allocation6 + $0x38] sm:$0xff]
    %v72 = vld [vmem:[#allocation6 + $0x40] sm:$0xff]
    %v73 = vld [vmem:[#allocation6 + $0x48] sm:$0xff]
    %v74 = vld [vmem:[#allocation6 + $0x50] sm:$0xff]
    %v75 = vld [vmem:[#allocation6 + $0x58] sm:$0xff]
    %v76 = vld [vmem:[#allocation6 + $0x60] sm:$0xff]
    %v77 = vld [vmem:[#allocation6 + $0x68] sm:$0xff]
    %v78 = vld [vmem:[#allocation6 + $0x70] sm:$0xff]
    %v79 = vld [vmem:[#allocation6 + $0x78] sm:$0xff]
    %80 = vmatprep.subr.mxu0 0.0
    %81 = vmatpush1.xpose.msra.mxu0 %v64
    %82 = vmatprep.subr.mxu0 0.0
    %83 = vmatpush1.xpose.msra.mxu0 %v65
    %84 = vmatprep.subr.mxu0 0.0
    %85 = vmatpush1.xpose.msra.mxu0 %v66
    %86 = vmatprep.subr.mxu0 0.0
    %87 = vmatpush1.xpose.msra.mxu0 %v67
    %88 = vmatprep.subr.mxu0 0.0
    %89 = vmatpush1.xpose.msra.mxu0 %v68
    %90 = vmatprep.subr.mxu0 0.0
    %91 = vmatpush1.xpose.msra.mxu0 %v69
    %92 = vmatprep.subr.mxu0 0.0
    %93 = vmatpush1.xpose.msra.mxu0 %v70
    %94 = vmatprep.subr.mxu0 0.0
    %95 = vmatpush1.xpose.msra.mxu0 %v71
    %96 = vmatprep.subr.mxu0 0.0
    %97 = vmatpush1.xpose.msra.mxu0 %v72
    %98 = vmatprep.subr.mxu0 0.0
    %99 = vmatpush1.xpose.msra.mxu0 %v73
    %100 = vmatprep.subr.mxu0 0.0
    %101 = vmatpush1.xpose.msra.mxu0 %v74
    %102 = vmatprep.subr.mxu0 0.0
    %103 = vmatpush1.xpose.msra.mxu0 %v75
    %104 = vmatprep.subr.mxu0 0.0
    %105 = vmatpush1.xpose.msra.mxu0 %v76
    %106 = vmatprep.subr.mxu0 0.0
    %107 = vmatpush1.xpose.msra.mxu0 %v77
    %108 = vmatprep.subr.mxu0 0.0
    %109 = vmatpush1.xpose.msra.mxu0 %v78
    %110 = vmatprep.subr.mxu0 0.0
    %111 = vmatpush1.xpose.msra.mxu0 %v79
    %112 = vmatprep.subr.mxu0 0.0
    %113 = vmatpush1.xpose.msra.mxu0 0.0
    %114 = vmatprep.subr.mxu0 0.0
    %115 = vmatpush1.xpose.msra.mxu0 0.0
    %116 = vmatprep.subr.mxu0 0.0
    %117 = vmatpush1.xpose.msra.mxu0 0.0
    %118 = vmatprep.subr.mxu0 0.0
    %119 = vmatpush1.xpose.msra.mxu0 0.0
    %120 = vmatprep.subr.mxu0 0.0
    %121 = vmatpush1.xpose.msra.mxu0 0.0
    %122 = vmatprep.subr.mxu0 0.0
    %123 = vmatpush1.xpose.msra.mxu0 0.0
    %124 = vmatprep.subr.mxu0 0.0
    %125 = vmatpush1.xpose.msra.mxu0 0.0
    %126 = vmatprep.subr.mxu0 0.0
    %127 = vmatpush1.xpose.msra.mxu0 0.0
    %128 = vmatprep.subr.mxu0 0.0
    %129 = vmatpush1.xpose.msra.mxu0 0.0
    %130 = vmatprep.subr.mxu0 0.0
    %131 = vmatpush1.xpose.msra.mxu0 0.0
    %132 = vmatprep.subr.mxu0 0.0
    %133 = vmatpush1.xpose.msra.mxu0 0.0
    %134 = vmatprep.subr.mxu0 0.0
    %135 = vmatpush1.xpose.msra.mxu0 0.0
    %136 = vmatprep.subr.mxu0 0.0
    %137 = vmatpush1.xpose.msra.mxu0 0.0
    %138 = vmatprep.subr.mxu0 0.0
    %139 = vmatpush1.xpose.msra.mxu0 0.0
    %140 = vmatprep.subr.mxu0 0.0
    %141 = vmatpush1.xpose.msra.mxu0 0.0
    %142 = vmatprep.subr.mxu0 0.0
    %143 = vmatpush1.xpose.msra.mxu0 0.0
    %144 = vmatprep.mubr.f32.mxu0 0.0
    %145 = vmatmul.mubr.f32.gmra.mrb[0].mxu0 %v62
    %v146 = vpop.f32.mrb[0].mxu0
    %v147 = vadd.f32 0.0, %v146
    %v148 = vpop.f32.mrb[0].mxu0
    %149 = vmatprep.mubr.f32.mxu0 0.0
    %150 = vmatmul.mubr.f32.gmra.mrb[0].mxu0 %v63
    %v151 = vpop.f32.mrb[0].mxu0
    %v152 = vadd.f32 0.0, %v151
    %v153 = vpop.f32.mrb[0].mxu0
    %154 = vdwg.mxu0
    %v155 = vmul.f32 %v147, 0.5
    %v156 = vmul.f32 %v152, 0.5
    %v157 = vmul.f32 %v147, 0.044715
    %v158 = vmul.f32 %v152, 0.044715
    %v159 = vmul.f32 %v157, %v147
    %v160 = vmul.f32 %v158, %v152
    %v161 = vmul.f32 %v159, %v147
    %v162 = vmul.f32 %v160, %v152
    %v163 = vadd.f32 %v147, %v161
    %v164 = vadd.f32 %v152, %v162
    %v165 = vmul.f32 %v163, 0.7978846
    %v166 = vmul.f32 %v164, 0.7978846
    %v167 = vtanh.pop %v165
    %v168 = vtanh.pop %v166
    %v169 = vadd.f32 %v167, 1.0
    %v170 = vadd.f32 %v168, 1.0
    %v171 = vmul.f32 %v155, %v169
    %v172 = vmul.f32 %v156, %v170
    %v173 = vld [vmem:[#allocation2] sm:$0xff]
    %v174 = vld [vmem:[#allocation2 + $0x8] sm:$0xff]
    %v175 = vld [vmem:[#allocation8] sm:$0xff]
    %v176 = vld [vmem:[#allocation8 + $0x8] sm:$0xff]
    %v177 = vld [vmem:[#allocation8 + $0x10] sm:$0xff]
    %v178 = vld [vmem:[#allocation8 + $0x18] sm:$0xff]
    %v179 = vld [vmem:[#allocation8 + $0x20] sm:$0xff]
    %v180 = vld [vmem:[#allocation8 + $0x28] sm:$0xff]
    %v181 = vld [vmem:[#allocation8 + $0x30] sm:$0xff]
    %v182 = vld [vmem:[#allocation8 + $0x38] sm:$0xff]
    %v183 = vld [vmem:[#allocation8 + $0x40] sm:$0xff]
    %v184 = vld [vmem:[#allocation8 + $0x48] sm:$0xff]
    %v185 = vld [vmem:[#allocation8 + $0x50] sm:$0xff]
    %v186 = vld [vmem:[#allocation8 + $0x58] sm:$0xff]
    %v187 = vld [vmem:[#allocation8 + $0x60] sm:$0xff]
    %v188 = vld [vmem:[#allocation8 + $0x68] sm:$0xff]
    %v189 = vld [vmem:[#allocation8 + $0x70] sm:$0xff]
    %v190 = vld [vmem:[#allocation8 + $0x78] sm:$0xff]
    %191 = vmatprep.subr.mxu0 0.0
    %192 = vmatpush1.xpose.msra.mxu0 %v175
    %193 = vmatprep.subr.mxu0 0.0
    %194 = vmatpush1.xpose.msra.mxu0 %v176
    %195 = vmatprep.subr.mxu0 0.0
    %196 = vmatpush1.xpose.msra.mxu0 %v177
    %197 = vmatprep.subr.mxu0 0.0
    %198 = vmatpush1.xpose.msra.mxu0 %v178
    %199 = vmatprep.subr.mxu0 0.0
    %200 = vmatpush1.xpose.msra.mxu0 %v179
    %201 = vmatprep.subr.mxu0 0.0
    %202 = vmatpush1.xpose.msra.mxu0 %v180
    %203 = vmatprep.subr.mxu0 0.0
    %204 = vmatpush1.xpose.msra.mxu0 %v181
    %205 = vmatprep.subr.mxu0 0.0
    %206 = vmatpush1.xpose.msra.mxu0 %v182
    %207 = vmatprep.subr.mxu0 0.0
    %208 = vmatpush1.xpose.msra.mxu0 %v183
    %209 = vmatprep.subr.mxu0 0.0
    %210 = vmatpush1.xpose.msra.mxu0 %v184
    %211 = vmatprep.subr.mxu0 0.0
    %212 = vmatpush1.xpose.msra.mxu0 %v185
    %213 = vmatprep.subr.mxu0 0.0
    %214 = vmatpush1.xpose.msra.mxu0 %v186
    %215 = vmatprep.subr.mxu0 0.0
    %216 = vmatpush1.xpose.msra.mxu0 %v187
    %217 = vmatprep.subr.mxu0 0.0
    %218 = vmatpush1.xpose.msra.mxu0 %v188
    %219 = vmatprep.subr.mxu0 0.0
    %220 = vmatpush1.xpose.msra.mxu0 %v189
    %221 = vmatprep.subr.mxu0 0.0
    %222 = vmatpush1.xpose.msra.mxu0 %v190
    %223 = vmatprep.subr.mxu0 0.0
    %224 = vmatpush1.xpose.msra.mxu0 0.0
    %225 = vmatprep.subr.mxu0 0.0
    %226 = vmatpush1.xpose.msra.mxu0 0.0
    %227 = vmatprep.subr.mxu0 0.0
    %228 = vmatpush1.xpose.msra.mxu0 0.0
    %229 = vmatprep.subr.mxu0 0.0
    %230 = vmatpush1.xpose.msra.mxu0 0.0
    %231 = vmatprep.subr.mxu0 0.0
    %232 = vmatpush1.xpose.msra.mxu0 0.0
    %233 = vmatprep.subr.mxu0 0.0
    %234 = vmatpush1.xpose.msra.mxu0 0.0
    %235 = vmatprep.subr.mxu0 0.0
    %236 = vmatpush1.xpose.msra.mxu0 0.0
    %237 = vmatprep.subr.mxu0 0.0
    %238 = vmatpush1.xpose.msra.mxu0 0.0
    %239 = vmatprep.subr.mxu0 0.0
    %240 = vmatpush1.xpose.msra.mxu0 0.0
    %241 = vmatprep.subr.mxu0 0.0
    %242 = vmatpush1.xpose.msra.mxu0 0.0
    %243 = vmatprep.subr.mxu0 0.0
    %244 = vmatpush1.xpose.msra.mxu0 0.0
    %245 = vmatprep.subr.mxu0 0.0
    %246 = vmatpush1.xpose.msra.mxu0 0.0
    %247 = vmatprep.subr.mxu0 0.0
    %248 = vmatpush1.xpose.msra.mxu0 0.0
    %249 = vmatprep.subr.mxu0 0.0
    %250 = vmatpush1.xpose.msra.mxu0 0.0
    %251 = vmatprep.subr.mxu0 0.0
    %252 = vmatpush1.xpose.msra.mxu0 0.0
    %253 = vmatprep.subr.mxu0 0.0
    %254 = vmatpush1.xpose.msra.mxu0 0.0
    %255 = vmatprep.mubr.f32.mxu0 0.0
    %256 = vmatmul.mubr.f32.gmra.mrb[0].mxu0 %v171
    %v257 = vpop.f32.mrb[0].mxu0
    %v258 = vadd.f32 0.0, %v257
    %v259 = vpop.f32.mrb[0].mxu0
    %260 = vmatprep.mubr.f32.mxu0 0.0
    %261 = vmatmul.mubr.f32.gmra.mrb[0].mxu0 %v172
    %v262 = vpop.f32.mrb[0].mxu0
    %v263 = vadd.f32 0.0, %v262
    %v264 = vpop.f32.mrb[0].mxu0
    %265 = vdwg.mxu0
    %v266 = vadd.f32 %v173, %v258
    %v267 = vadd.f32 %v174, %v263
    %268 = vst [vmem:[#allocation2] sm:$0xff] %v266
    %269 = vst [vmem:[#allocation2 + $0x8] sm:$0xff] %v267
    // Predicated region
    $region30: #{tpu_custom_call.1} parent=1 // pred_check
      %p270 = pneg %p56
    $region31: #{tpu_custom_call.1} parent=1 // pred_check_branch
      %272 = sbr.rel (%p270) target = $region33
    $region32: #{tpu_custom_call.1} parent=1 // pred_region
      %v273 = vld [vmem:[#allocation2] sm:$0xff]
      %v274 = vld [vmem:[#allocation2 + $0x8] sm:$0xff]
      %275 = vst [vmem:[#allocation9] sm:$0xff] %v273
      %276 = vst [vmem:[#allocation9 + $0x8] sm:$0xff] %v274
    $region33: #{tpu_custom_call.1} parent=1 // pred_fallthru
      _
    // Predicated region
    $region34: #{tpu_custom_call.1} parent=1 // pred_check
      _
    $region35: #{tpu_custom_call.1} parent=1 // pred_check_branch
      %278 = sbr.rel (0) target = $region37
    $region36: #{tpu_custom_call.1} parent=1 // pred_region
      %s280 = ssub.s32 256, 256
      %281 = vsyncadd [#allocation5], %s280
      %s282 = sshll.u32 [#allocation9], 4
      %s283 = int_to_ptr.vmem [resolvable:$true] %s282
      %288 = dma.vmem_to_hbm [thread:$0]  %s283, 256, %s3, [#allocation5], 128, 128, 8
    $region37: #{tpu_custom_call.1} parent=1 // pred_fallthru
      _
    // Predicated region
    $region38: #{tpu_custom_call.1} parent=1 // pred_check
      _
    $region39: #{tpu_custom_call.1} parent=1 // pred_check_branch
      %290 = sbr.rel (0) target = $region41
    $region40: #{tpu_custom_call.1} parent=1 // pred_region
      %291 = dma.done [#allocation5], 256
    $region41: #{tpu_custom_call.1} parent=1 // pred_fallthru
      _
    %292 = vsyncpa [#allocation4], 1
    %293 = vsyncpa [#allocation7], 1
    %294 = vsyncpa [#allocation5], 1

</llo_original>
